<compile_context>
chip_gen: v7x
topology: tpu7x:2x2x1
jax: 0.10.0
libtpu: 0.0.40
codegen_flags: <defaults>
</compile_context>

<pallas_src>
import jax
import jax.numpy as jnp
from jax.experimental import pallas as pl
from jax.experimental.pallas import tpu as pltpu


def _round_up(x, m):
    return (x + m - 1) // m * m


def qnetwork_kernel(x_ref, w1_ref, b1_ref, w2_ref, b2_ref, out_ref):
    """out = relu(x @ W1 + b1) @ W2 + b2 ; bf16 MXU operands, f32 accumulate.

    x:  (TB, S)  f32   (cast to bf16 in-kernel)
    w1: (S, Hp)  bf16  (hidden padded to 128 lanes, resident)
    b1: (1, Hp)  f32
    w2: (Hp, Ap) bf16  (resident)
    b2: (1, A)   f32   (real action columns only)
    out:(TB, A)  f32   (narrow, real Q-values only)
    """
    a = out_ref.shape[-1]
    x = x_ref[...].astype(jnp.bfloat16)                      # in-kernel cast
    h = jnp.dot(x, w1_ref[...],
                preferred_element_type=jnp.float32)          # MXU, f32 acc
    h = jnp.maximum(h + b1_ref[...], 0.0)                    # bias + ReLU, f32 VPU
    act = jnp.dot(h.astype(jnp.bfloat16), w2_ref[...],
                  preferred_element_type=jnp.float32)        # MXU, f32 acc
    out_ref[...] = (act[:, :a] + b2_ref[...]).astype(out_ref.dtype)


def prepare_params(w1, b1, w2, b2):
    """One-time parameter prep (re-run only when params change).

    Pads the hidden dim to a lane-dense multiple of 128 (zeros: relu(0+0)=0
    flows through zero rows of w2, so Q-values are unchanged) and casts the
    matmul weights to bf16.  b2 stays at the real action width.
    """
    S, H = w1.shape
    A = w2.shape[1]
    Hp = _round_up(max(H, 128), 128)
    Ap = _round_up(max(A, 128), 128)
    w1p = jnp.zeros((S, Hp), jnp.bfloat16).at[:, :H].set(w1.astype(jnp.bfloat16))
    b1p = jnp.zeros((1, Hp), jnp.float32).at[:, :H].set(
        b1.reshape(1, H).astype(jnp.float32))
    w2p = jnp.zeros((Hp, Ap), jnp.bfloat16).at[:H, :A].set(w2.astype(jnp.bfloat16))
    b2r = b2.reshape(1, A).astype(jnp.float32)
    return (w1p, b1p, w2p, b2r)


def qnetwork_forward(state, prepared, *, block_batch=4096):
    """state: (B, S) f32; prepared = prepare_params(w1, b1, w2, b2).

    Returns (B, A) f32 Q-values (relu(fc1(state)) -> fc2), with bf16 MXU
    operands / f32 accumulation.
    """
    w1p, b1p, w2p, b2r = prepared
    B, S = state.shape
    Hp = w1p.shape[1]
    Ap = w2p.shape[1]
    A = b2r.shape[1]
    H = min(Hp, 64) if Hp >= 64 else Hp  # real hidden size only used for flops hint
    H = w1p.shape[1] if False else 64 if Hp == 128 else Hp  # keep flops hint simple

    # Batch tile: multiple of 8 (f32 sublanes); split so v7x's two TensorCores
    # each get a grid step when the batch allows; capped so tiles stay small.
    half = -(-B // 2)
    TB = max(8, min(_round_up(block_batch, 8),
                    _round_up(half, 8),
                    _round_up(B, 8)))
    grid = (pl.cdiv(B, TB),)

    cost = pl.CostEstimate(
        flops=2 * B * (S * Hp + Hp * A),
        transcendentals=0,
        bytes_accessed=(B * S * 4                 # state (f32, read once)
                        + S * Hp * 2 + Hp * Ap * 2  # resident bf16 weights
                        + Hp * 4 + A * 4            # biases (f32)
                        + B * A * 4))               # narrow f32 output

    out = pl.pallas_call(
        qnetwork_kernel,
        out_shape=jax.ShapeDtypeStruct((B, A), jnp.float32),
        grid=grid,
        in_specs=[
            pl.BlockSpec((TB, S), lambda i: (i, 0)),     # batch-tiled state
            pl.BlockSpec((S, Hp), lambda i: (0, 0)),     # resident weights
            pl.BlockSpec((1, Hp), lambda i: (0, 0)),
            pl.BlockSpec((Hp, Ap), lambda i: (0, 0)),
            pl.BlockSpec((1, A), lambda i: (0, 0)),
        ],
        out_specs=pl.BlockSpec((TB, A), lambda i: (i, 0)),  # narrow output
        compiler_params=pltpu.CompilerParams(
            dimension_semantics=("parallel",)),             # both TCs on v7x
        cost_estimate=cost,
    )(state, w1p, b1p, w2p, b2r)

    return out


def init_params(key, state_size, action_size, hidden=64):
    """Deterministic init mimicking PyTorch nn.Linear default (U[-1/sqrt(fan_in), +])."""
    k1, k2, k3, k4 = jax.random.split(key, 4)
    lim1 = 1.0 / jnp.sqrt(jnp.float32(state_size))
    lim2 = 1.0 / jnp.sqrt(jnp.float32(hidden))
    w1 = jax.random.uniform(k1, (state_size, hidden), jnp.float32, -lim1, lim1)
    b1 = jax.random.uniform(k2, (1, hidden), jnp.float32, -lim1, lim1)
    w2 = jax.random.uniform(k3, (hidden, action_size), jnp.float32, -lim2, lim2)
    b2 = jax.random.uniform(k4, (1, action_size), jnp.float32, -lim2, lim2)
    return w1, b1, w2, b2


if __name__ == "__main__":
    key = jax.random.PRNGKey(0)
    k_x, k_p = jax.random.split(key)

    batch, state_size, action_size = 8, 16, 4
    state = jax.random.normal(k_x, (batch, state_size), jnp.float32)
    w1, b1, w2, b2 = init_params(k_p, state_size, action_size)

    prepared = prepare_params(w1, b1, w2, b2)     # one-time param prep
    out = qnetwork_forward(state, prepared)
    out = jax.block_until_ready(out)

    # Pure-JAX reference with the same bf16-operand / f32-accumulate precision.
    xb = state.astype(jnp.bfloat16)
    h_ref = jnp.maximum(
        jnp.dot(xb, w1.astype(jnp.bfloat16),
                preferred_element_type=jnp.float32) + b1, 0.0)
    ref = jnp.dot(h_ref.astype(jnp.bfloat16), w2.astype(jnp.bfloat16),
                  preferred_element_type=jnp.float32) + b2

    assert out.shape == (batch, action_size), out.shape
    assert jnp.allclose(out, ref, atol=1e-4, rtol=1e-4), (
        f"max abs err = {jnp.max(jnp.abs(out - ref))}")

    print("KERNEL_OK")
</pallas_src>

<mosaic_0001>
module attributes {stable_mosaic.version = 11 : i64} {
  func.func @qnetwork_kernel(%arg0: i32, %arg1: memref<8x16xf32, #tpu.memory_space<vmem>>, %arg2: memref<16x128xbf16, #tpu.memory_space<vmem>>, %arg3: memref<1x128xf32, #tpu.memory_space<vmem>>, %arg4: memref<128x128xbf16, #tpu.memory_space<vmem>>, %arg5: memref<1x4xf32, #tpu.memory_space<vmem>>, %arg6: memref<8x4xf32, #tpu.memory_space<vmem>>) attributes {dimension_semantics = [#tpu.dimension_semantics<parallel>], iteration_bounds = array<i64: 1>, scalar_prefetch = 0 : i64, scratch_operands = 0 : i64, tpu.core_type = #tpu.core_type<tc>, window_params = [{transform_indices = @transform_0, window_bounds = array<i64: 8, 16>}, {pipeline_mode = #tpu.pipeline_mode<synchronous>, transform_indices = @transform_1, window_bounds = array<i64: 16, 128>}, {pipeline_mode = #tpu.pipeline_mode<synchronous>, transform_indices = @transform_2, window_bounds = array<i64: 1, 128>}, {pipeline_mode = #tpu.pipeline_mode<synchronous>, transform_indices = @transform_3, window_bounds = array<i64: 128, 128>}, {pipeline_mode = #tpu.pipeline_mode<synchronous>, transform_indices = @transform_4, window_bounds = array<i64: 1, 4>}, {transform_indices = @transform_5, window_bounds = array<i64: 8, 4>}]} {
    %c0 = arith.constant 0 : index
    %c0_0 = arith.constant 0 : index
    %0 = vector.load %arg1[%c0, %c0_0] : memref<8x16xf32, #tpu.memory_space<vmem>>, vector<8x16xf32>
    %1 = arith.truncf %0 : vector<8x16xf32> to vector<8x16xbf16>
    %c0_1 = arith.constant 0 : index
    %c0_2 = arith.constant 0 : index
    %2 = vector.load %arg2[%c0_1, %c0_2] : memref<16x128xbf16, #tpu.memory_space<vmem>>, vector<16x128xbf16>
    %cst = arith.constant dense<0.000000e+00> : vector<8x128xf32>
    %3 = tpu.matmul %1, %2, %cst {dimension_numbers = #tpu.dot_dimension_numbers<[1], [0], [0], [1], [0, 0, 1, 1], [], []>} : vector<8x16xbf16>, vector<16x128xbf16>, vector<8x128xf32> -> vector<8x128xf32>
    %c0_3 = arith.constant 0 : index
    %c0_4 = arith.constant 0 : index
    %4 = vector.load %arg3[%c0_3, %c0_4] : memref<1x128xf32, #tpu.memory_space<vmem>>, vector<1x128xf32>
    %5 = vector.broadcast %4 : vector<1x128xf32> to vector<8x128xf32>
    %6 = arith.addf %3, %5 : vector<8x128xf32>
    %cst_5 = arith.constant 0.000000e+00 : f32
    %7 = vector.broadcast %cst_5 : f32 to vector<8x128xf32>
    %8 = arith.maximumf %6, %7 : vector<8x128xf32>
    %9 = arith.truncf %8 : vector<8x128xf32> to vector<8x128xbf16>
    %c0_6 = arith.constant 0 : index
    %c0_7 = arith.constant 0 : index
    %10 = vector.load %arg4[%c0_6, %c0_7] : memref<128x128xbf16, #tpu.memory_space<vmem>>, vector<128x128xbf16>
    %cst_8 = arith.constant dense<0.000000e+00> : vector<8x128xf32>
    %11 = tpu.matmul %9, %10, %cst_8 {dimension_numbers = #tpu.dot_dimension_numbers<[1], [0], [0], [1], [0, 0, 1, 1], [], []>} : vector<8x128xbf16>, vector<128x128xbf16>, vector<8x128xf32> -> vector<8x128xf32>
    %12 = vector.extract_strided_slice %11 {offsets = [0, 0], sizes = [8, 4], strides = [1, 1]} : vector<8x128xf32> to vector<8x4xf32>
    %c0_9 = arith.constant 0 : index
    %c0_10 = arith.constant 0 : index
    %13 = vector.load %arg5[%c0_9, %c0_10] : memref<1x4xf32, #tpu.memory_space<vmem>>, vector<1x4xf32>
    %14 = vector.broadcast %13 : vector<1x4xf32> to vector<8x4xf32>
    %15 = arith.addf %12, %14 : vector<8x4xf32>
    %c0_11 = arith.constant 0 : index
    %c0_12 = arith.constant 0 : index
    %16 = vector.load %arg6[%c0_11, %c0_12] : memref<8x4xf32, #tpu.memory_space<vmem>>, vector<8x4xf32>
    tpu.vector_store %arg6[%c0_11, %c0_12], %15 {strides = array<i32>} : memref<8x4xf32, #tpu.memory_space<vmem>>, vector<8x4xf32>,
    return
  }
  func.func @transform_0(%arg0: i32) -> (i32, i32) {
    %c0_i32 = arith.constant 0 : i32
    %c0_i32_0 = arith.constant 0 : i32
    return %arg0, %c0_i32 : i32, i32
  }
  func.func @transform_1(%arg0: i32) -> (i32, i32) {
    %c0_i32 = arith.constant 0 : i32
    %c0_i32_0 = arith.constant 0 : i32
    %c0_i32_1 = arith.constant 0 : i32
    return %c0_i32, %c0_i32_0 : i32, i32
  }
  func.func @transform_2(%arg0: i32) -> (i32, i32) {
    %c0_i32 = arith.constant 0 : i32
    %c0_i32_0 = arith.constant 0 : i32
    %c0_i32_1 = arith.constant 0 : i32
    return %c0_i32, %c0_i32_0 : i32, i32
  }
  func.func @transform_3(%arg0: i32) -> (i32, i32) {
    %c0_i32 = arith.constant 0 : i32
    %c0_i32_0 = arith.constant 0 : i32
    %c0_i32_1 = arith.constant 0 : i32
    return %c0_i32, %c0_i32_0 : i32, i32
  }
  func.func @transform_4(%arg0: i32) -> (i32, i32) {
    %c0_i32 = arith.constant 0 : i32
    %c0_i32_0 = arith.constant 0 : i32
    %c0_i32_1 = arith.constant 0 : i32
    return %c0_i32, %c0_i32_0 : i32, i32
  }
  func.func @transform_5(%arg0: i32) -> (i32, i32) {
    %c0_i32 = arith.constant 0 : i32
    %c0_i32_0 = arith.constant 0 : i32
    return %arg0, %c0_i32 : i32, i32
  }
}

</mosaic_0001>

<llo_original>
// kernel: tpu_custom_call.1
$region0: #{tpu_custom_call.1}
  #allocation0 [shape = 'u32[]', space=smem, size = 0x4, offset = 0x4, fixed_abs, tag = 'smem constant byte address 0x4 - core index']
  #allocation1 [shape = 'u32[144,128]{1,0:T(1,128)}', space=vmem, size = 0x12000, scoped, tag = 'internal scratch']
  %s0 = inlined_call_operand.hbm [shape: f32[8,16], index: 0, kind: input, shape index: {}]
  %s1 = inlined_call_operand.hbm [shape: bf16[16,128], index: 1, kind: input, shape index: {}]
  %s2 = inlined_call_operand.vmem [shape: f32[1,128], index: 2, kind: input, shape index: {}]
  %s3 = inlined_call_operand.hbm [shape: bf16[128,128], index: 3, kind: input, shape index: {}]
  %s4 = inlined_call_operand.vmem [shape: f32[1,4], index: 4, kind: input, shape index: {}]
  %s5 = inlined_call_operand.vmem [shape: f32[8,4], index: 5, kind: output, shape index: {}]
  %s6 = sld [smem:[#allocation0]]
  $region42: #{tpu_custom_call.1} parent=0
    _
  %s8 = ssub.s32 1, %s6
  %s9 = scalar_select 0, %s8, %s6
  $region1: #{tpu_custom_call.1} parent=0
    #allocation2 [shape = 'u8[4096]{0}', space=vmem, size = 0x1000, scoped, tag = 'input window, operand 0, single buffered']
    #allocation3 [shape = 's32[1]{0}', space=sflag, size = 0x4, scoped, tag = 'scoped memory for tpu_custom_call.1']
    #allocation4 [shape = 'u8[4096]{0}', space=vmem, size = 0x1000, scoped, tag = 'input window, operand 1, single buffered']
    #allocation5 [shape = 's32[1]{0}', space=sflag, size = 0x4, scoped, tag = 'scoped memory for tpu_custom_call.1']
    #allocation6 [shape = 'u8[32768]{0}', space=vmem, size = 0x8000, scoped, tag = 'input window, operand 3, single buffered']
    %10 = vsyncpa [#allocation3], 0
    %11 = vsyncpa [#allocation5], 0
    // Predicated region
    $region2: #{tpu_custom_call.1} parent=1 // pred_check
      _
    $region3: #{tpu_custom_call.1} parent=1 // pred_check_branch
      %13 = sbr.rel (0) target = $region5
    $region4: #{tpu_custom_call.1} parent=1 // pred_region
      %s15 = ssub.s32 128, 128
      %16 = vsyncadd [#allocation3], %s15
      %s18 = sshll.u32 [#allocation2], 4
      %s19 = int_to_ptr.vmem [resolvable:$true] %s18
      %21 = dma.hbm_to_vmem [thread:$0]  %s0, 128, %s19, [#allocation3]
    $region5: #{tpu_custom_call.1} parent=1 // pred_fallthru
      _
    // Predicated region
    $region6: #{tpu_custom_call.1} parent=1 // pred_check
      _
    $region7: #{tpu_custom_call.1} parent=1 // pred_check_branch
      %23 = sbr.rel (0) target = $region9
    $region8: #{tpu_custom_call.1} parent=1 // pred_region
      %s25 = ssub.s32 128, 128
      %26 = vsyncadd [#allocation5], %s25
      %s27 = sshll.u32 [#allocation4], 4
      %s28 = int_to_ptr.vmem [resolvable:$true] %s27
      %33 = dma.hbm_to_vmem [thread:$0]  %s1, 128, %s28, [#allocation5], 64, 64, 4
    $region9: #{tpu_custom_call.1} parent=1 // pred_fallthru
      _
    // Predicated region
    $region10: #{tpu_custom_call.1} parent=1 // pred_check
      _
    $region11: #{tpu_custom_call.1} parent=1 // pred_check_branch
      %35 = sbr.rel (0) target = $region13
    $region12: #{tpu_custom_call.1} parent=1 // pred_region
      _
    $region13: #{tpu_custom_call.1} parent=1 // pred_fallthru
      _
    // Predicated region
    $region14: #{tpu_custom_call.1} parent=1 // pred_check
      _
    $region15: #{tpu_custom_call.1} parent=1 // pred_check_branch
      %37 = sbr.rel (0) target = $region17
    $region16: #{tpu_custom_call.1} parent=1 // pred_region
      %s39 = ssub.s32 1024, 1024
      %40 = vsyncadd [#allocation5], %s39
      %s41 = sshll.u32 [#allocation6], 4
      %s42 = int_to_ptr.vmem [resolvable:$true] %s41
      %47 = dma.hbm_to_vmem [thread:$0]  %s3, 1024, %s42, [#allocation5], 64, 64, 4
    $region17: #{tpu_custom_call.1} parent=1 // pred_fallthru
      _
    // Predicated region
    $region18: #{tpu_custom_call.1} parent=1 // pred_check
      _
    $region19: #{tpu_custom_call.1} parent=1 // pred_check_branch
      %49 = sbr.rel (0) target = $region21
    $region20: #{tpu_custom_call.1} parent=1 // pred_region
      _
    $region21: #{tpu_custom_call.1} parent=1 // pred_fallthru
      _
    // Predicated region
    $region22: #{tpu_custom_call.1} parent=1 // pred_check
      _
    $region23: #{tpu_custom_call.1} parent=1 // pred_check_branch
      %51 = sbr.rel (0) target = $region25
    $region24: #{tpu_custom_call.1} parent=1 // pred_region
      %52 = dma.done [#allocation3], 128
    $region25: #{tpu_custom_call.1} parent=1 // pred_fallthru
      _
    // Predicated region
    $region26: #{tpu_custom_call.1} parent=1 // pred_check
      _
    $region27: #{tpu_custom_call.1} parent=1 // pred_check_branch
      %54 = sbr.rel (0) target = $region29
    $region28: #{tpu_custom_call.1} parent=1 // pred_region
      %55 = dma.done [#allocation5], 128
    $region29: #{tpu_custom_call.1} parent=1 // pred_fallthru
      _
    // Predicated region
    $region30: #{tpu_custom_call.1} parent=1 // pred_check
      _
    $region31: #{tpu_custom_call.1} parent=1 // pred_check_branch
      %57 = sbr.rel (0) target = $region33
    $region32: #{tpu_custom_call.1} parent=1 // pred_region
      %58 = dma.done [#allocation5], 1024
    $region33: #{tpu_custom_call.1} parent=1 // pred_fallthru
      _
    %v60 = vld [vmem:[#allocation2] sm:$0xff]
    %v61 = vpack.c.bf16 %v60, %v60
    %v62 = vld [vmem:[#allocation4] sm:$0xf]
    %v63 = vld [vmem:[#allocation4 + $0x4] sm:$0xf]
    %v64 = vld [vmem:[%s2] sm:$0x1]
    %v66 = vlaneseq
    %v67 = vshrl.u32 %v66, 7
    %v68 = vsub.s32 0, %v67
    %v69 = vrot.slane %v64, %v68
    %v73 = vunpack.c.l.b16 %v62
    %v74 = vunpack.c.l.b16 %v63
    %v75 = vpack.c.b16 %v74, %v73
    %vm77 = vcmask 130048
    %v79 = vsel %vm77, %v61, 0
    %81 = vmatprep.subr.bf16.mxu0 0
    %82 = vmatpush1.bf16.msra.mxu0 %v75
    %83 = vmatprep.subr.bf16.mxu0 0
    %84 = vmatpush1.bf16.msra.mxu0 0
    %85 = vmatprep.subr.bf16.mxu0 0
    %86 = vmatpush1.bf16.msra.mxu0 0
    %87 = vmatprep.subr.bf16.mxu0 0
    %88 = vmatpush1.bf16.msra.mxu0 0
    %89 = vmatprep.subr.bf16.mxu0 0
    %90 = vmatpush1.bf16.msra.mxu0 0
    %91 = vmatprep.subr.bf16.mxu0 0
    %92 = vmatpush1.bf16.msra.mxu0 0
    %93 = vmatprep.subr.bf16.mxu0 0
    %94 = vmatpush1.bf16.msra.mxu0 0
    %95 = vmatprep.subr.bf16.mxu0 0
    %96 = vmatpush1.bf16.msra.mxu0 0
    %97 = vmatprep.subr.bf16.mxu0 0
    %98 = vmatpush1.bf16.msra.mxu0 0
    %99 = vmatprep.subr.bf16.mxu0 0
    %100 = vmatpush1.bf16.msra.mxu0 0
    %101 = vmatprep.subr.bf16.mxu0 0
    %102 = vmatpush1.bf16.msra.mxu0 0
    %103 = vmatprep.subr.bf16.mxu0 0
    %104 = vmatpush1.bf16.msra.mxu0 0
    %105 = vmatprep.subr.bf16.mxu0 0
    %106 = vmatpush1.bf16.msra.mxu0 0
    %107 = vmatprep.subr.bf16.mxu0 0
    %108 = vmatpush1.bf16.msra.mxu0 0
    %109 = vmatprep.subr.bf16.mxu0 0
    %110 = vmatpush1.bf16.msra.mxu0 0
    %111 = vmatprep.subr.bf16.mxu0 0
    %112 = vmatpush1.bf16.msra.mxu0 0
    %113 = vmatprep.mubr.bf16.mxu0 0
    %114 = vmatmul.mubr.bf16.gmra.mrb[0].mxu0 %v79
    %v115 = vpop.f32.mrb[0].mxu0
    %v116 = vadd.f32 %v69, %v115
    %v117 = vpop.f32.mrb[0].mxu0
    %v118 = vpop.f32.mrb[0].mxu0
    %v119 = vpop.f32.mrb[0].mxu0
    %120 = vdwg.mxu0
    %v121 = vmax.f32 %v116, 0.0
    %v122 = vpack.c.bf16 %v121, %v121
    %v123 = vld [vmem:[#allocation6] sm:$0xf]
    %v124 = vld [vmem:[#allocation6 + $0x4] sm:$0xf]
    %v125 = vld [vmem:[#allocation6 + $0x8] sm:$0xf]
    %v126 = vld [vmem:[#allocation6 + $0xc] sm:$0xf]
    %v127 = vld [vmem:[#allocation6 + $0x10] sm:$0xf]
    %v128 = vld [vmem:[#allocation6 + $0x14] sm:$0xf]
    %v129 = vld [vmem:[#allocation6 + $0x18] sm:$0xf]
    %v130 = vld [vmem:[#allocation6 + $0x1c] sm:$0xf]
    %v131 = vld [vmem:[#allocation6 + $0x20] sm:$0xf]
    %v132 = vld [vmem:[#allocation6 + $0x24] sm:$0xf]
    %v133 = vld [vmem:[#allocation6 + $0x28] sm:$0xf]
    %v134 = vld [vmem:[#allocation6 + $0x2c] sm:$0xf]
    %v135 = vld [vmem:[#allocation6 + $0x30] sm:$0xf]
    %v136 = vld [vmem:[#allocation6 + $0x34] sm:$0xf]
    %v137 = vld [vmem:[#allocation6 + $0x38] sm:$0xf]
    %v138 = vld [vmem:[#allocation6 + $0x3c] sm:$0xf]
    %v155 = vunpack.c.l.b16 %v123
    %v156 = vunpack.c.l.b16 %v124
    %v157 = vunpack.c.l.b16 %v125
    %v158 = vunpack.c.l.b16 %v126
    %v159 = vunpack.c.l.b16 %v127
    %v160 = vunpack.c.l.b16 %v128
    %v161 = vunpack.c.l.b16 %v129
    %v162 = vunpack.c.l.b16 %v130
    %v163 = vunpack.c.l.b16 %v131
    %v164 = vunpack.c.l.b16 %v132
    %v165 = vunpack.c.l.b16 %v133
    %v166 = vunpack.c.l.b16 %v134
    %v167 = vunpack.c.l.b16 %v135
    %v168 = vunpack.c.l.b16 %v136
    %v169 = vunpack.c.l.b16 %v137
    %v170 = vunpack.c.l.b16 %v138
    %v171 = vpack.c.b16 %v156, %v155
    %v172 = vpack.c.b16 %v158, %v157
    %v173 = vpack.c.b16 %v160, %v159
    %v174 = vpack.c.b16 %v162, %v161
    %v175 = vpack.c.b16 %v164, %v163
    %v176 = vpack.c.b16 %v166, %v165
    %v177 = vpack.c.b16 %v168, %v167
    %v178 = vpack.c.b16 %v170, %v169
    %187 = vmatprep.subr.bf16.mxu0 0
    %188 = vmatpush1.bf16.msra.mxu0 %v171
    %189 = vmatprep.subr.bf16.mxu0 0
    %190 = vmatpush1.bf16.msra.mxu0 %v172
    %191 = vmatprep.subr.bf16.mxu0 0
    %192 = vmatpush1.bf16.msra.mxu0 %v173
    %193 = vmatprep.subr.bf16.mxu0 0
    %194 = vmatpush1.bf16.msra.mxu0 %v174
    %195 = vmatprep.subr.bf16.mxu0 0
    %196 = vmatpush1.bf16.msra.mxu0 %v175
    %197 = vmatprep.subr.bf16.mxu0 0
    %198 = vmatpush1.bf16.msra.mxu0 %v176
    %199 = vmatprep.subr.bf16.mxu0 0
    %200 = vmatpush1.bf16.msra.mxu0 %v177
    %201 = vmatprep.subr.bf16.mxu0 0
    %202 = vmatpush1.bf16.msra.mxu0 %v178
    %203 = vmatprep.subr.bf16.mxu0 0
    %204 = vmatpush1.bf16.msra.mxu0 0
    %205 = vmatprep.subr.bf16.mxu0 0
    %206 = vmatpush1.bf16.msra.mxu0 0
    %207 = vmatprep.subr.bf16.mxu0 0
    %208 = vmatpush1.bf16.msra.mxu0 0
    %209 = vmatprep.subr.bf16.mxu0 0
    %210 = vmatpush1.bf16.msra.mxu0 0
    %211 = vmatprep.subr.bf16.mxu0 0
    %212 = vmatpush1.bf16.msra.mxu0 0
    %213 = vmatprep.subr.bf16.mxu0 0
    %214 = vmatpush1.bf16.msra.mxu0 0
    %215 = vmatprep.subr.bf16.mxu0 0
    %216 = vmatpush1.bf16.msra.mxu0 0
    %217 = vmatprep.subr.bf16.mxu0 0
    %218 = vmatpush1.bf16.msra.mxu0 0
    %219 = vmatprep.mubr.bf16.mxu0 0
    %220 = vmatmul.mubr.bf16.gmra.mrb[0].mxu0 %v122
    %v221 = vpop.f32.mrb[0].mxu0
    %v222 = vadd.f32 0.0, %v221
    %v223 = vpop.f32.mrb[0].mxu0
    %v224 = vpop.f32.mrb[0].mxu0
    %v225 = vpop.f32.mrb[0].mxu0
    %226 = vdwg.mxu0
    %v227 = vld [vmem:[%s4] sm:$0x1]
    %v229 = vlaneseq
    %v230 = vshrl.u32 %v229, 7
    %v231 = vsub.s32 0, %v230
    %v232 = vrot.slane %v227, %v231
    %v234 = vadd.f32 %v222, %v232
    %vm235 = vcmask 31744
    %236 = vst.msk [vmem:[%s5] sm:$0xff] %vm235, %v234
    // Predicated region
    $region34: #{tpu_custom_call.1} parent=1 // pred_check
      _
    $region35: #{tpu_custom_call.1} parent=1 // pred_check_branch
      %238 = sbr.rel (0) target = $region37
    $region36: #{tpu_custom_call.1} parent=1 // pred_region
      _
    $region37: #{tpu_custom_call.1} parent=1 // pred_fallthru
      _
    // Predicated region
    $region38: #{tpu_custom_call.1} parent=1 // pred_check
      _
    $region39: #{tpu_custom_call.1} parent=1 // pred_check_branch
      %240 = sbr.rel (0) target = $region41
    $region40: #{tpu_custom_call.1} parent=1 // pred_region
      _
    $region41: #{tpu_custom_call.1} parent=1 // pred_fallthru
      _
    %241 = vsyncpa [#allocation3], 1
    %242 = vsyncpa [#allocation5], 1

</llo_original>
